<compile_context>
chip_gen: v7x
topology: tpu7x:2x2x1
jax: 0.10.0
libtpu: 0.0.40
codegen_flags: <defaults>
</compile_context>

<pallas_src>
import functools

import jax
import jax.numpy as jnp
from jax import lax
from jax.experimental import pallas as pl
from jax.experimental.pallas import tpu as pltpu


_MAX_TB = 2048


# --------------------------- chip-aware knobs --------------------------------

def _device_kind():
    try:
        return jax.devices()[0].device_kind.lower()
    except Exception:  # pragma: no cover - defensive
        return ""


def _tc_per_chip():
    """TensorCores per chip: v5e / v6e are single-core, v7x (and older megacore
    parts) expose 2.  Only used to decide how many batch blocks to emit."""
    kind = _device_kind()
    if "v5 lite" in kind or "v5lite" in kind or "v5e" in kind or "v6" in kind:
        return 1
    return 2


def _default_act_dtype():
    """bf16 elementwise (EUP/VPU) on v6e / v7x; f32 on v5e / unknown parts."""
    kind = _device_kind()
    if "v6" in kind or "7" in kind:
        return jnp.bfloat16
    return jnp.float32


def _batch_blocking(B, n_cores):
    """Pick (TB, n_blocks): TB multiple of 128 (lane-dense, unmasked stores),
    blocks as large as possible (grid-step overhead ~0.35us dominates this
    tiny MLP), >= n_cores blocks when the batch allows so the 'parallel' batch
    axis shards across TensorCores on megacore parts."""
    if B <= 128:
        return 128, 1                       # pad small batches to a full lane tile
    round128 = lambda n: ((n + 127) // 128) * 128
    n_blocks = max(n_cores, pl.cdiv(B, _MAX_TB))
    TB = round128(pl.cdiv(B, n_blocks))
    return TB, n_blocks


# ----------------------------- shared MLP math --------------------------------

def _silu(h_f32, act_dtype):
    """SiLU kept on the EUP slot (exp + reciprocal).  bf16 on v6e/v7x (packed
    EUP/VPU, result feeds the next MXU matmul without a further cast); f32
    path uses the approximate EUP reciprocal."""
    ha = h_f32.astype(act_dtype)
    if jnp.dtype(act_dtype) == jnp.dtype(jnp.float32):
        sig = pl.reciprocal(1.0 + jnp.exp(-ha), approx=True)
    else:
        sig = 1.0 / (1.0 + jnp.exp(-ha))
    return ha * sig


def _velocity(x, b1_eff, w1x, w2, b2, w3, b3, *, act_dtype):
    """Velocity MLP in transposed (feature, batch) layout.

    x: (D, TB) f32.  Matmul weights w1x (H1,D), w2 (H2,H1), w3 (D,H2) are
    pre-cast to the MXU compute dtype by the wrapper.  b1_eff = w1t*t + b1
    folds the concat([x, t]) t-column and layer-1 bias into one (H1,1) term.
    b2 / b3 may be (H,1) or pre-broadcast (H,TB).  f32 accumulation; SiLU in
    act_dtype.
    """
    cd = w1x.dtype
    h = jnp.dot(w1x, x.astype(cd), preferred_element_type=jnp.float32) + b1_eff
    a = _silu(h, act_dtype)
    h = jnp.dot(w2, a.astype(cd), preferred_element_type=jnp.float32) + b2
    a = _silu(h, act_dtype)
    return jnp.dot(w3, a.astype(cd), preferred_element_type=jnp.float32) + b3


# -------------------------------- kernels --------------------------------------

def _forward_kernel(x_ref, t_ref, w1x_ref, w1t_ref, b1_ref, w2_ref, b2_ref,
                    w3_ref, b3_ref, o_ref, *, act_dtype):
    t = t_ref[0, 0]                                           # SMEM scalar
    b1_eff = w1t_ref[...] * t + b1_ref[...]                   # fold t-column + bias
    out = _velocity(x_ref[...], b1_eff, w1x_ref[...], w2_ref[...], b2_ref[...],
                    w3_ref[...], b3_ref[...], act_dtype=act_dtype)
    o_ref[...] = out.astype(o_ref.dtype)


def _sample_kernel(xT_ref, w1x_ref, w1t_ref, b1_ref, w2_ref, b2_ref,
                   w3_ref, b3_ref, o_ref, *, n_steps, method, act_dtype, unroll):
    """Fused fixed-step integration from t=1 -> t=0 (ODEFlow.sample)."""
    # Weights load once and stay resident across every solver step.
    w1x = w1x_ref[...]
    w1t = w1t_ref[...]
    b1 = b1_ref[...]
    w2 = w2_ref[...]
    w3 = w3_ref[...]
    TB = xT_ref.shape[1]
    # Hoist the (H,1)->(H,TB) bias broadcasts out of the (unrolled) loop:
    # JAX does not CSE broadcast_in_dim.
    b2 = jnp.broadcast_to(b2_ref[...], (b2_ref.shape[0], TB))
    b3 = jnp.broadcast_to(b3_ref[...], (b3_ref.shape[0], TB))
    dt = 1.0 / n_steps

    def f(t, x):
        return _velocity(x, w1t * t + b1, w1x, w2, b2, w3, b3,
                         act_dtype=act_dtype)

    def step(k, x):
        t = 1.0 - lax.convert_element_type(k, jnp.float32) * dt
        if method == "euler":
            v = f(t, x)
        elif method == "midpoint":
            v = f(t - 0.5 * dt, x - (0.5 * dt) * f(t, x))
        else:  # rk4
            k1 = f(t, x)
            k2 = f(t - 0.5 * dt, x - (0.5 * dt) * k1)
            k3 = f(t - 0.5 * dt, x - (0.5 * dt) * k2)
            k4 = f(t - dt, x - dt * k3)
            v = (k1 + 2.0 * (k2 + k3) + k4) * (1.0 / 6.0)
        return x - dt * v                                     # integrate 1 -> 0

    x0 = lax.fori_loop(0, n_steps, step, xT_ref[...].astype(jnp.float32),
                       unroll=unroll)
    o_ref[...] = x0.astype(o_ref.dtype)


# -------------------------------- wrappers --------------------------------------

def _cast_weights(params, compute_dtype):
    """Pre-cast MXU operands to the compute dtype; biases / t-column stay f32."""
    cd = compute_dtype
    return (params["w1x"].astype(cd), params["w1t"], params["b1"],
            params["w2"].astype(cd), params["b2"],
            params["w3"].astype(cd), params["b3"])


def _mlp_specs(weights, TB, D, with_t):
    tiled = lambda i: (0, i)
    resident = lambda i: (0, 0)
    specs = [pl.BlockSpec((D, TB), tiled)]
    if with_t:
        specs.append(pl.BlockSpec((1, 1), resident,
                                  memory_space=pltpu.MemorySpace.SMEM))
    specs += [pl.BlockSpec(w.shape, resident) for w in weights]
    return specs, pl.BlockSpec((D, TB), tiled)


def _run_forward(t_arr, x_db, params, compute_dtype, act_dtype):
    """Velocity MLP on a lane-dense (D, B) state.  Returns (D, B)."""
    D, B = x_db.shape
    H1 = params["w1x"].shape[0]
    H2 = params["w2"].shape[0]

    TB, n_blocks = _batch_blocking(B, _tc_per_chip())
    Bp = TB * n_blocks
    if Bp != B:
        x_db = jnp.pad(x_db, ((0, 0), (0, Bp - B)))

    weights = _cast_weights(params, compute_dtype)
    in_specs, out_spec = _mlp_specs(weights, TB, D, with_t=True)

    cost = pl.CostEstimate(
        flops=2 * Bp * (D * H1 + H1 * H2 + H2 * D) + 8 * Bp * (H1 + H2),
        transcendentals=Bp * (H1 + H2),
        bytes_accessed=4 * 2 * D * Bp
        + sum(int(w.size) * w.dtype.itemsize for w in weights),
    )

    out = pl.pallas_call(
        functools.partial(_forward_kernel, act_dtype=act_dtype),
        out_shape=jax.ShapeDtypeStruct((D, Bp), x_db.dtype),
        grid_spec=pltpu.PrefetchScalarGridSpec(
            num_scalar_prefetch=0,
            grid=(n_blocks,),
            in_specs=in_specs,
            out_specs=out_spec),
        compiler_params=pltpu.CompilerParams(
            dimension_semantics=("parallel",)),
        cost_estimate=cost,
    )(x_db, t_arr, *weights)
    return out[:, :B]


@functools.partial(jax.jit, static_argnames=("compute_dtype", "act_dtype"))
def ode_flow_forward(t, x, params, compute_dtype=jnp.bfloat16, act_dtype=None):
    """ODEFlow.forward / dynamics: dxdt = velocity(concat([x, t])).

    PyTorch (B, D) layout.  For solver loops prefer `ode_flow_forward_t`,
    which keeps the state lane-dense and avoids per-call transposes.
    """
    if act_dtype is None:
        act_dtype = _default_act_dtype()
    t_arr = jnp.asarray(t, jnp.float32)
    assert t_arr.size == 1, (
        "ode_flow_forward supports the scalar t passed by the ODE solver; "
        "per-sample t (flow_matching_loss path) is not implemented.")
    # TODO(synk): per-sample t would ship as a (1, B) lane row, not SMEM scalar.
    out_t = _run_forward(t_arr.reshape(1, 1), x.T, params, compute_dtype, act_dtype)
    return out_t.T


@functools.partial(jax.jit, static_argnames=("compute_dtype", "act_dtype"))
def ode_flow_forward_t(t, x_db, params, compute_dtype=jnp.bfloat16, act_dtype=None):
    """Same as `ode_flow_forward` but on lane-dense (D, B) state (solver loops:
    transpose once outside the loop, not once per RHS evaluation)."""
    if act_dtype is None:
        act_dtype = _default_act_dtype()
    t_arr = jnp.asarray(t, jnp.float32)
    assert t_arr.size == 1, "scalar t only"
    return _run_forward(t_arr.reshape(1, 1), x_db, params, compute_dtype, act_dtype)


@functools.partial(jax.jit,
                   static_argnames=("n_steps", "method", "compute_dtype", "act_dtype"))
def ode_flow_sample(xT, params, n_steps=8, method="euler",
                    compute_dtype=jnp.bfloat16, act_dtype=None):
    """ODEFlow.sample with a fixed-step solver (euler / midpoint / rk4) fused
    into a single kernel: weights + state stay on-chip for every RHS eval.
    target_scale/target_shift default to identity in the module; apply them to
    the returned samples if configured."""
    if act_dtype is None:
        act_dtype = _default_act_dtype()
    assert method in ("euler", "midpoint", "rk4")
    B, D = xT.shape
    H1 = params["w1x"].shape[0]
    H2 = params["w2"].shape[0]

    TB, n_blocks = _batch_blocking(B, _tc_per_chip())
    Bp = TB * n_blocks
    x_db = xT.T                                               # one transpose per sample call
    if Bp != B:
        x_db = jnp.pad(x_db, ((0, 0), (0, Bp - B)))

    weights = _cast_weights(params, compute_dtype)
    in_specs, out_spec = _mlp_specs(weights, TB, D, with_t=False)

    n_evals = {"euler": 1, "midpoint": 2, "rk4": 4}[method] * n_steps
    cost = pl.CostEstimate(
        flops=n_evals * (2 * Bp * (D * H1 + H1 * H2 + H2 * D) + 8 * Bp * (H1 + H2)),
        transcendentals=n_evals * Bp * (H1 + H2),
        bytes_accessed=4 * 2 * D * Bp
        + sum(int(w.size) * w.dtype.itemsize for w in weights),
    )
    unroll = TB <= 512            # guard vreg pressure / spills at large tiles

    out = pl.pallas_call(
        functools.partial(_sample_kernel, n_steps=n_steps, method=method,
                          act_dtype=act_dtype, unroll=unroll),
        out_shape=jax.ShapeDtypeStruct((D, Bp), xT.dtype),
        grid_spec=pltpu.PrefetchScalarGridSpec(
            num_scalar_prefetch=0,
            grid=(n_blocks,),
            in_specs=in_specs,
            out_specs=out_spec),
        compiler_params=pltpu.CompilerParams(
            dimension_semantics=("parallel",)),
        cost_estimate=cost,
    )(x_db, *weights)
    return out[:, :B].T


# ------------------------------ params & refs -----------------------------------

def init_ode_flow_params(key, target_dimension, hidden_units):
    """nn.Linear-style init (uniform +-1/sqrt(fan_in)), PyTorch (out, in) layout.
    Specialised to the module's two-hidden-layer architecture family."""
    assert len(hidden_units) == 2
    arch = [target_dimension + 1] + list(hidden_units) + [target_dimension]
    keys = jax.random.split(key, 2 * (len(arch) - 1))
    Ws, bs = [], []
    for i in range(len(arch) - 1):
        fan_in, fan_out = arch[i], arch[i + 1]
        bound = 1.0 / float(fan_in) ** 0.5
        Ws.append(jax.random.uniform(keys[2 * i], (fan_out, fan_in),
                                     jnp.float32, -bound, bound))
        bs.append(jax.random.uniform(keys[2 * i + 1], (fan_out, 1),
                                     jnp.float32, -bound, bound))
    D = target_dimension
    return {
        "w1x": Ws[0][:, :D],        # (H1, D)   x-columns of W1
        "w1t": Ws[0][:, D:],        # (H1, 1)   t-column of W1
        "b1": bs[0],                # (H1, 1)
        "w2": Ws[1], "b2": bs[1],   # (H2, H1), (H2, 1)
        "w3": Ws[2], "b3": bs[2],   # (D, H2),  (D, 1)
    }


def _reference_velocity_f32(t, x, params):
    """Faithful f32 re-implementation of ODEFlow.dynamics (PyTorch semantics)."""
    B = x.shape[0]
    inputs = jnp.concatenate([x, jnp.full((B, 1), t, x.dtype)], axis=1)
    w1 = jnp.concatenate([params["w1x"], params["w1t"]], axis=1)      # (H1, D+1)
    h = inputs @ w1.T + params["b1"].T
    h = h * jax.nn.sigmoid(h)
    h = h @ params["w2"].T + params["b2"].T
    h = h * jax.nn.sigmoid(h)
    return h @ params["w3"].T + params["b3"].T


def _reference_velocity_mirrored(t, x, params, compute_dtype, act_dtype):
    """Reference mirroring the kernel precision (matmul dtype + SiLU dtype)."""
    cd = compute_dtype

    def silu(h):
        ha = h.astype(act_dtype)
        return ha * jax.nn.sigmoid(ha)

    h = jnp.dot(x.astype(cd), params["w1x"].T.astype(cd),
                preferred_element_type=jnp.float32)
    h = h + t * params["w1t"].T + params["b1"].T
    a = silu(h)
    h = jnp.dot(a.astype(cd), params["w2"].T.astype(cd),
                preferred_element_type=jnp.float32) + params["b2"].T
    a = silu(h)
    return jnp.dot(a.astype(cd), params["w3"].T.astype(cd),
                   preferred_element_type=jnp.float32) + params["b3"].T


def _reference_sample(xT, params, n_steps, method, compute_dtype, act_dtype):
    dt = 1.0 / n_steps
    f = lambda t, x: _reference_velocity_mirrored(t, x, params, compute_dtype, act_dtype)
    x = xT
    for k in range(n_steps):
        t = 1.0 - k * dt
        if method == "euler":
            v = f(t, x)
        elif method == "midpoint":
            v = f(t - 0.5 * dt, x - 0.5 * dt * f(t, x))
        else:
            k1 = f(t, x)
            k2 = f(t - 0.5 * dt, x - 0.5 * dt * k1)
            k3 = f(t - 0.5 * dt, x - 0.5 * dt * k2)
            k4 = f(t - dt, x - dt * k3)
            v = (k1 + 2.0 * (k2 + k3) + k4) / 6.0
        x = x - dt * v
    return x


# ---------------------------------- demo ------------------------------------------

if __name__ == "__main__":
    key = jax.random.PRNGKey(0)
    k_param, k_x1, k_x2, k_x3, k_t, k_s = jax.random.split(key, 6)

    target_dimension = 4
    hidden_units = [32, 32]
    params = init_ode_flow_params(k_param, target_dimension, hidden_units)
    t_scalar = jax.random.uniform(k_t, (), jnp.float32)

    cd = jnp.bfloat16
    act = _default_act_dtype()

    # Forward (dynamics): gridded / padded / tiny-batch cases.
    for B, k in ((256, k_x1), (200, k_x2), (8, k_x3)):
        x = jax.random.normal(k, (B, target_dimension), jnp.float32)
        dxdt = jax.block_until_ready(
            ode_flow_forward(t_scalar, x, params, compute_dtype=cd, act_dtype=act))
        assert dxdt.shape == (B, target_dimension)

        ref_m = _reference_velocity_mirrored(t_scalar, x, params, cd, act)
        assert jnp.allclose(dxdt, ref_m, atol=3e-2, rtol=3e-2), \
            f"mismatch vs mirrored-precision reference (B={B})"
        ref_f = _reference_velocity_f32(t_scalar, x, params)
        assert jnp.allclose(dxdt, ref_f, atol=8e-2, rtol=8e-2), \
            f"mismatch vs f32 PyTorch-semantics reference (B={B})"

    # Lane-dense (D, B) entry point used inside solver loops.
    x = jax.random.normal(k_x1, (256, target_dimension), jnp.float32)
    d_t = jax.block_until_ready(
        ode_flow_forward_t(t_scalar, x.T, params, compute_dtype=cd, act_dtype=act))
    d_bd = ode_flow_forward(t_scalar, x, params, compute_dtype=cd, act_dtype=act)
    assert jnp.allclose(d_t.T, d_bd, atol=1e-5, rtol=1e-5), "layout-path mismatch"

    # Fused fixed-step samplers (ODEFlow.sample analogue).
    B = 256
    xT = jax.random.normal(k_s, (B, target_dimension), jnp.float32)
    for method, n_steps in (("euler", 8), ("rk4", 4)):
        x0 = jax.block_until_ready(
            ode_flow_sample(xT, params, n_steps=n_steps, method=method,
                            compute_dtype=cd, act_dtype=act))
        assert x0.shape == (B, target_dimension)
        ref = _reference_sample(xT, params, n_steps, method, cd, act)
        assert jnp.allclose(x0, ref, atol=4e-2, rtol=4e-2), \
            f"mismatch (fused {method} sampler)"

    print("KERNEL_OK")
</pallas_src>

<mosaic_0001>
module attributes {stable_mosaic.version = 11 : i64} {
  func.func @_forward_kernel(%arg0: i32, %arg1: memref<4x128xf32, #tpu.memory_space<vmem>>, %arg2: memref<1x1xf32, #tpu.memory_space<smem>>, %arg3: memref<32x4xbf16, #tpu.memory_space<vmem>>, %arg4: memref<32x1xf32, #tpu.memory_space<vmem>>, %arg5: memref<32x1xf32, #tpu.memory_space<vmem>>, %arg6: memref<32x32xbf16, #tpu.memory_space<vmem>>, %arg7: memref<32x1xf32, #tpu.memory_space<vmem>>, %arg8: memref<4x32xbf16, #tpu.memory_space<vmem>>, %arg9: memref<4x1xf32, #tpu.memory_space<vmem>>, %arg10: memref<4x128xf32, #tpu.memory_space<vmem>>) attributes {dimension_semantics = [#tpu.dimension_semantics<parallel>], iteration_bounds = array<i64: 2>, scalar_prefetch = 0 : i64, scratch_operands = 0 : i64, tpu.core_type = #tpu.core_type<tc>, window_params = [{transform_indices = @transform_0, window_bounds = array<i64: 4, 128>}, {transform_indices = @transform_1, window_bounds = array<i64: 1, 1>}, {pipeline_mode = #tpu.pipeline_mode<synchronous>, transform_indices = @transform_2, window_bounds = array<i64: 32, 4>}, {pipeline_mode = #tpu.pipeline_mode<synchronous>, transform_indices = @transform_3, window_bounds = array<i64: 32, 1>}, {pipeline_mode = #tpu.pipeline_mode<synchronous>, transform_indices = @transform_4, window_bounds = array<i64: 32, 1>}, {pipeline_mode = #tpu.pipeline_mode<synchronous>, transform_indices = @transform_5, window_bounds = array<i64: 32, 32>}, {pipeline_mode = #tpu.pipeline_mode<synchronous>, transform_indices = @transform_6, window_bounds = array<i64: 32, 1>}, {pipeline_mode = #tpu.pipeline_mode<synchronous>, transform_indices = @transform_7, window_bounds = array<i64: 4, 32>}, {pipeline_mode = #tpu.pipeline_mode<synchronous>, transform_indices = @transform_8, window_bounds = array<i64: 4, 1>}, {transform_indices = @transform_9, window_bounds = array<i64: 4, 128>}]} {
    %c0 = arith.constant 0 : index
    %c0_0 = arith.constant 0 : index
    %0 = memref.load %arg2[%c0, %c0_0] : memref<1x1xf32, #tpu.memory_space<smem>>
    %c0_1 = arith.constant 0 : index
    %c0_2 = arith.constant 0 : index
    %1 = vector.load %arg4[%c0_1, %c0_2] : memref<32x1xf32, #tpu.memory_space<vmem>>, vector<32x1xf32>
    %2 = vector.broadcast %0 : f32 to vector<32x1xf32>
    %3 = arith.mulf %1, %2 : vector<32x1xf32>
    %c0_3 = arith.constant 0 : index
    %c0_4 = arith.constant 0 : index
    %4 = vector.load %arg5[%c0_3, %c0_4] : memref<32x1xf32, #tpu.memory_space<vmem>>, vector<32x1xf32>
    %5 = arith.addf %3, %4 : vector<32x1xf32>
    %c0_5 = arith.constant 0 : index
    %c0_6 = arith.constant 0 : index
    %6 = vector.load %arg1[%c0_5, %c0_6] : memref<4x128xf32, #tpu.memory_space<vmem>>, vector<4x128xf32>
    %c0_7 = arith.constant 0 : index
    %c0_8 = arith.constant 0 : index
    %7 = vector.load %arg3[%c0_7, %c0_8] : memref<32x4xbf16, #tpu.memory_space<vmem>>, vector<32x4xbf16>
    %c0_9 = arith.constant 0 : index
    %c0_10 = arith.constant 0 : index
    %8 = vector.load %arg6[%c0_9, %c0_10] : memref<32x32xbf16, #tpu.memory_space<vmem>>, vector<32x32xbf16>
    %c0_11 = arith.constant 0 : index
    %c0_12 = arith.constant 0 : index
    %9 = vector.load %arg7[%c0_11, %c0_12] : memref<32x1xf32, #tpu.memory_space<vmem>>, vector<32x1xf32>
    %c0_13 = arith.constant 0 : index
    %c0_14 = arith.constant 0 : index
    %10 = vector.load %arg8[%c0_13, %c0_14] : memref<4x32xbf16, #tpu.memory_space<vmem>>, vector<4x32xbf16>
    %c0_15 = arith.constant 0 : index
    %c0_16 = arith.constant 0 : index
    %11 = vector.load %arg9[%c0_15, %c0_16] : memref<4x1xf32, #tpu.memory_space<vmem>>, vector<4x1xf32>
    %12 = arith.truncf %6 : vector<4x128xf32> to vector<4x128xbf16>
    %cst = arith.constant dense<0.000000e+00> : vector<32x128xf32>
    %13 = tpu.matmul %7, %12, %cst {dimension_numbers = #tpu.dot_dimension_numbers<[1], [0], [0], [1], [0, 0, 1, 1], [], []>} : vector<32x4xbf16>, vector<4x128xbf16>, vector<32x128xf32> -> vector<32x128xf32>
    %14 = vector.broadcast %5 : vector<32x1xf32> to vector<32x128xf32>
    %15 = arith.addf %13, %14 : vector<32x128xf32>
    %cst_17 = arith.constant 0.000000e+00 : f32
    %16 = vector.broadcast %cst_17 : f32 to vector<32x128xf32>
    %17 = arith.subf %16, %15 : vector<32x128xf32>
    %18 = math.exp %17 : vector<32x128xf32>
    %cst_18 = arith.constant 1.000000e+00 : f32
    %19 = vector.broadcast %cst_18 : f32 to vector<32x128xf32>
    %20 = arith.addf %19, %18 : vector<32x128xf32>
    %21 = tpu.reciprocal %20 {approx = true} : vector<32x128xf32> -> vector<32x128xf32>
    %22 = arith.mulf %15, %21 : vector<32x128xf32>
    %23 = arith.truncf %22 : vector<32x128xf32> to vector<32x128xbf16>
    %cst_19 = arith.constant dense<0.000000e+00> : vector<32x128xf32>
    %24 = tpu.matmul %8, %23, %cst_19 {dimension_numbers = #tpu.dot_dimension_numbers<[1], [0], [0], [1], [0, 0, 1, 1], [], []>} : vector<32x32xbf16>, vector<32x128xbf16>, vector<32x128xf32> -> vector<32x128xf32>
    %25 = vector.broadcast %9 : vector<32x1xf32> to vector<32x128xf32>
    %26 = arith.addf %24, %25 : vector<32x128xf32>
    %cst_20 = arith.constant 0.000000e+00 : f32
    %27 = vector.broadcast %cst_20 : f32 to vector<32x128xf32>
    %28 = arith.subf %27, %26 : vector<32x128xf32>
    %29 = math.exp %28 : vector<32x128xf32>
    %cst_21 = arith.constant 1.000000e+00 : f32
    %30 = vector.broadcast %cst_21 : f32 to vector<32x128xf32>
    %31 = arith.addf %30, %29 : vector<32x128xf32>
    %32 = tpu.reciprocal %31 {approx = true} : vector<32x128xf32> -> vector<32x128xf32>
    %33 = arith.mulf %26, %32 : vector<32x128xf32>
    %34 = arith.truncf %33 : vector<32x128xf32> to vector<32x128xbf16>
    %cst_22 = arith.constant dense<0.000000e+00> : vector<4x128xf32>
    %35 = tpu.matmul %10, %34, %cst_22 {dimension_numbers = #tpu.dot_dimension_numbers<[1], [0], [0], [1], [0, 0, 1, 1], [], []>} : vector<4x32xbf16>, vector<32x128xbf16>, vector<4x128xf32> -> vector<4x128xf32>
    %36 = vector.broadcast %11 : vector<4x1xf32> to vector<4x128xf32>
    %37 = arith.addf %35, %36 : vector<4x128xf32>
    %c0_23 = arith.constant 0 : index
    %c0_24 = arith.constant 0 : index
    %38 = vector.load %arg10[%c0_23, %c0_24] : memref<4x128xf32, #tpu.memory_space<vmem>>, vector<4x128xf32>
    tpu.vector_store %arg10[%c0_23, %c0_24], %37 {strides = array<i32>} : memref<4x128xf32, #tpu.memory_space<vmem>>, vector<4x128xf32>,
    return
  }
  func.func @transform_0(%arg0: i32) -> (i32, i32) {
    %c0_i32 = arith.constant 0 : i32
    %c0_i32_0 = arith.constant 0 : i32
    return %c0_i32, %arg0 : i32, i32
  }
  func.func @transform_1(%arg0: i32) -> (i32, i32) {
    %c0_i32 = arith.constant 0 : i32
    %c0_i32_0 = arith.constant 0 : i32
    %c0_i32_1 = arith.constant 0 : i32
    return %c0_i32, %c0_i32_0 : i32, i32
  }
  func.func @transform_2(%arg0: i32) -> (i32, i32) {
    %c0_i32 = arith.constant 0 : i32
    %c0_i32_0 = arith.constant 0 : i32
    %c0_i32_1 = arith.constant 0 : i32
    return %c0_i32, %c0_i32_0 : i32, i32
  }
  func.func @transform_3(%arg0: i32) -> (i32, i32) {
    %c0_i32 = arith.constant 0 : i32
    %c0_i32_0 = arith.constant 0 : i32
    %c0_i32_1 = arith.constant 0 : i32
    return %c0_i32, %c0_i32_0 : i32, i32
  }
  func.func @transform_4(%arg0: i32) -> (i32, i32) {
    %c0_i32 = arith.constant 0 : i32
    %c0_i32_0 = arith.constant 0 : i32
    %c0_i32_1 = arith.constant 0 : i32
    return %c0_i32, %c0_i32_0 : i32, i32
  }
  func.func @transform_5(%arg0: i32) -> (i32, i32) {
    %c0_i32 = arith.constant 0 : i32
    %c0_i32_0 = arith.constant 0 : i32
    %c0_i32_1 = arith.constant 0 : i32
    return %c0_i32, %c0_i32_0 : i32, i32
  }
  func.func @transform_6(%arg0: i32) -> (i32, i32) {
    %c0_i32 = arith.constant 0 : i32
    %c0_i32_0 = arith.constant 0 : i32
    %c0_i32_1 = arith.constant 0 : i32
    return %c0_i32, %c0_i32_0 : i32, i32
  }
  func.func @transform_7(%arg0: i32) -> (i32, i32) {
    %c0_i32 = arith.constant 0 : i32
    %c0_i32_0 = arith.constant 0 : i32
    %c0_i32_1 = arith.constant 0 : i32
    return %c0_i32, %c0_i32_0 : i32, i32
  }
  func.func @transform_8(%arg0: i32) -> (i32, i32) {
    %c0_i32 = arith.constant 0 : i32
    %c0_i32_0 = arith.constant 0 : i32
    %c0_i32_1 = arith.constant 0 : i32
    return %c0_i32, %c0_i32_0 : i32, i32
  }
  func.func @transform_9(%arg0: i32) -> (i32, i32) {
    %c0_i32 = arith.constant 0 : i32
    %c0_i32_0 = arith.constant 0 : i32
    return %c0_i32, %arg0 : i32, i32
  }
}

</mosaic_0001>

<llo_original>
// kernel: ode_flow_forward.1
$region0: #{ode_flow_forward.1}
  #allocation0 [shape = 'u32[]', space=smem, size = 0x4, offset = 0x4, fixed_abs, tag = 'smem constant byte address 0x4 - core index']
  #allocation1 [shape = 'u32[144,128]{1,0:T(1,128)}', space=vmem, size = 0x12000, scoped, tag = 'internal scratch']
  #allocation2 [shape = 'f32[1,1]{1,0:T(1,128)S(6)}', space=smem, size = 0x200, scoped, tag = 'scoped memory for ode_flow_forward.1']
  %s0 = inlined_call_operand.vmem [shape: f32[4,256], index: 0, kind: input, shape index: {}]
  %s1 = inlined_call_operand.<no memory space> [shape: f32[1,1], index: 1, kind: input, shape index: {}]
  %s2 = inlined_call_operand.vmem [shape: bf16[32,4], index: 2, kind: input, shape index: {}]
  %s3 = inlined_call_operand.vmem [shape: f32[32,1], index: 3, kind: input, shape index: {}]
  %s4 = inlined_call_operand.vmem [shape: f32[32,1], index: 4, kind: input, shape index: {}]
  %s5 = inlined_call_operand.vmem [shape: bf16[32,32], index: 5, kind: input, shape index: {}]
  %s6 = inlined_call_operand.vmem [shape: f32[32,1], index: 6, kind: input, shape index: {}]
  %s7 = inlined_call_operand.vmem [shape: bf16[4,32], index: 7, kind: input, shape index: {}]
  %s8 = inlined_call_operand.vmem [shape: f32[4,1], index: 8, kind: input, shape index: {}]
  %s9 = inlined_call_operand.hbm [shape: f32[4,256], index: 9, kind: output, shape index: {}]
  %s10 = sld [smem:[#allocation0]]
  $region69: #{ode_flow_forward.1} parent=0
    _
  %s12 = ssub.s32 1, %s10
  %s13 = scalar_select 0, %s12, %s10
  %14 = sst [smem:[#allocation2]] %s1
  $region1: #{ode_flow_forward.1} parent=0
    #allocation3 [shape = 'u8[4096]{0}', space=vmem, size = 0x1000, scoped, tag = 'output window, operand 0']
    #allocation4 [shape = 's32[2]{0}', space=sflag, size = 0x8, scoped, tag = 'scoped memory for ode_flow_forward.1']
    %15 = vsyncpa [#allocation4], 0
    %s16 = scalar_lea.sflag [#allocation4], 1
    %17 = vsyncpa %s16, 0
    loop: start=0, step=1, limit=4
    $region2: #{ode_flow_forward.1} parent=1 // loop_pre_header
      _
    $region3: #{ode_flow_forward.1} parent=1 // loop_header
      %s19 = sphi 0, %s23
      %p20 = scmp.ge.s32.totalorder %s19, 4
      %s29 = sphi 0, %s31
      %s32 = sphi 0, %s29
      %s33 = sphi 0, %s32
      %s49 = sphi 0, %s33
      %s53 = sphi 0, %s53
      %s55 = sphi 0, %s53
      %s56 = sphi 0, %s55
      %s70 = sphi 0, %s56
      %s74 = sphi 0, %s74
      %s76 = sphi 0, %s74
      %s77 = sphi 0, %s76
      %s91 = sphi 0, %s77
      %s95 = sphi 0, %s95
      %s97 = sphi 0, %s95
      %s98 = sphi 0, %s97
      %s112 = sphi 0, %s98
      %s116 = sphi 0, %s116
      %s118 = sphi 0, %s116
      %s119 = sphi 0, %s118
      %s133 = sphi 0, %s119
      %s137 = sphi 0, %s137
      %s139 = sphi 0, %s137
      %s140 = sphi 0, %s139
      %s154 = sphi 0, %s140
      %s158 = sphi 0, %s158
      %s160 = sphi 0, %s158
      %s161 = sphi 0, %s160
      %s175 = sphi 0, %s161
      %s179 = sphi 0, %s179
      %s181 = sphi 0, %s179
      %s182 = sphi 0, %s181
      %s196 = sphi 0, %s182
      %s200 = sphi 0, %s200
      %s202 = sphi 0, %s200
      %s203 = sphi 0, %s202
      %s217 = sphi 0, %s203
      %s223 = sphi 0, %s225
      %s226 = sphi 0, %s223
      %s227 = sphi 0, %s226
      %s243 = sphi 0, %s227
    $region4: #{ode_flow_forward.1} parent=1 // loop_header_branch
      %22 = sbr.rel (%p20) target = $region8
    $region5: #{ode_flow_forward.1} parent=1 // loop_body
      %s24 = ssub.s32 %s19, 1
      %s25 = ssub.s32 %s19, 2
      %s26 = sadd.s32 %s19, 1
      %s27 = ssub.s32 %s19, %s26
      %p28 = scmp.eq.s32.totalorder %s27, 0
      %s30 = sadd.s32 %s29, 1
      %s31 = scalar_select %p28, %s29, %s30
      %p34 = pneg %p28
      %p35 = scmp.eq.s32.totalorder %s19, 1
      %p36 = por %p34, %p35
      %p37 = scmp.ne.s32.totalorder %s29, %s32
      %p38 = scmp.eq.s32.totalorder %s19, 0
      %p39 = por %p37, %p38
      %p40 = scmp.ne.s32.totalorder %s29, %s32
      %p41 = scmp.eq.s32.totalorder %s24, 1
      %p42 = por %p40, %p41
      %p43 = scmp.ne.s32.totalorder %s32, %s33
      %p44 = scmp.eq.s32.totalorder %s24, 0
      %p45 = por %p43, %p44
      %p46 = scmp.ne.s32.totalorder %s32, %s33
      %p47 = scmp.eq.s32.totalorder %s25, 1
      %p48 = por %p46, %p47
      %p50 = scmp.ne.s32.totalorder %s33, %s49
      %p51 = scmp.eq.s32.totalorder %s25, 0
      %p52 = por %p50, %p51
      %s54 = sadd.s32 %s53, 1
      %p57 = scmp.eq.s32.totalorder %s19, 1
      %p58 = scmp.ne.s32.totalorder %s53, %s55
      %p59 = scmp.eq.s32.totalorder %s19, 0
      %p60 = por %p58, %p59
      %p61 = scmp.ne.s32.totalorder %s53, %s55
      %p62 = scmp.eq.s32.totalorder %s24, 1
      %p63 = por %p61, %p62
      %p64 = scmp.ne.s32.totalorder %s55, %s56
      %p65 = scmp.eq.s32.totalorder %s24, 0
      %p66 = por %p64, %p65
      %p67 = scmp.ne.s32.totalorder %s55, %s56
      %p68 = scmp.eq.s32.totalorder %s25, 1
      %p69 = por %p67, %p68
      %p71 = scmp.ne.s32.totalorder %s56, %s70
      %p72 = scmp.eq.s32.totalorder %s25, 0
      %p73 = por %p71, %p72
      %s75 = sadd.s32 %s74, 1
      %p78 = scmp.eq.s32.totalorder %s19, 1
      %p79 = scmp.ne.s32.totalorder %s74, %s76
      %p80 = scmp.eq.s32.totalorder %s19, 0
      %p81 = por %p79, %p80
      %p82 = scmp.ne.s32.totalorder %s74, %s76
      %p83 = scmp.eq.s32.totalorder %s24, 1
      %p84 = por %p82, %p83
      %p85 = scmp.ne.s32.totalorder %s76, %s77
      %p86 = scmp.eq.s32.totalorder %s24, 0
      %p87 = por %p85, %p86
      %p88 = scmp.ne.s32.totalorder %s76, %s77
      %p89 = scmp.eq.s32.totalorder %s25, 1
      %p90 = por %p88, %p89
      %p92 = scmp.ne.s32.totalorder %s77, %s91
      %p93 = scmp.eq.s32.totalorder %s25, 0
      %p94 = por %p92, %p93
      %s96 = sadd.s32 %s95, 1
      %p99 = scmp.eq.s32.totalorder %s19, 1
      %p100 = scmp.ne.s32.totalorder %s95, %s97
      %p101 = scmp.eq.s32.totalorder %s19, 0
      %p102 = por %p100, %p101
      %p103 = scmp.ne.s32.totalorder %s95, %s97
      %p104 = scmp.eq.s32.totalorder %s24, 1
      %p105 = por %p103, %p104
      %p106 = scmp.ne.s32.totalorder %s97, %s98
      %p107 = scmp.eq.s32.totalorder %s24, 0
      %p108 = por %p106, %p107
      %p109 = scmp.ne.s32.totalorder %s97, %s98
      %p110 = scmp.eq.s32.totalorder %s25, 1
      %p111 = por %p109, %p110
      %p113 = scmp.ne.s32.totalorder %s98, %s112
      %p114 = scmp.eq.s32.totalorder %s25, 0
      %p115 = por %p113, %p114
      %s117 = sadd.s32 %s116, 1
      %p120 = scmp.eq.s32.totalorder %s19, 1
      %p121 = scmp.ne.s32.totalorder %s116, %s118
      %p122 = scmp.eq.s32.totalorder %s19, 0
      %p123 = por %p121, %p122
      %p124 = scmp.ne.s32.totalorder %s116, %s118
      %p125 = scmp.eq.s32.totalorder %s24, 1
      %p126 = por %p124, %p125
      %p127 = scmp.ne.s32.totalorder %s118, %s119
      %p128 = scmp.eq.s32.totalorder %s24, 0
      %p129 = por %p127, %p128
      %p130 = scmp.ne.s32.totalorder %s118, %s119
      %p131 = scmp.eq.s32.totalorder %s25, 1
      %p132 = por %p130, %p131
      %p134 = scmp.ne.s32.totalorder %s119, %s133
      %p135 = scmp.eq.s32.totalorder %s25, 0
      %p136 = por %p134, %p135
      %s138 = sadd.s32 %s137, 1
      %p141 = scmp.eq.s32.totalorder %s19, 1
      %p142 = scmp.ne.s32.totalorder %s137, %s139
      %p143 = scmp.eq.s32.totalorder %s19, 0
      %p144 = por %p142, %p143
      %p145 = scmp.ne.s32.totalorder %s137, %s139
      %p146 = scmp.eq.s32.totalorder %s24, 1
      %p147 = por %p145, %p146
      %p148 = scmp.ne.s32.totalorder %s139, %s140
      %p149 = scmp.eq.s32.totalorder %s24, 0
      %p150 = por %p148, %p149
      %p151 = scmp.ne.s32.totalorder %s139, %s140
      %p152 = scmp.eq.s32.totalorder %s25, 1
      %p153 = por %p151, %p152
      %p155 = scmp.ne.s32.totalorder %s140, %s154
      %p156 = scmp.eq.s32.totalorder %s25, 0
      %p157 = por %p155, %p156
      %s159 = sadd.s32 %s158, 1
      %p162 = scmp.eq.s32.totalorder %s19, 1
      %p163 = scmp.ne.s32.totalorder %s158, %s160
      %p164 = scmp.eq.s32.totalorder %s19, 0
      %p165 = por %p163, %p164
      %p166 = scmp.ne.s32.totalorder %s158, %s160
      %p167 = scmp.eq.s32.totalorder %s24, 1
      %p168 = por %p166, %p167
      %p169 = scmp.ne.s32.totalorder %s160, %s161
      %p170 = scmp.eq.s32.totalorder %s24, 0
      %p171 = por %p169, %p170
      %p172 = scmp.ne.s32.totalorder %s160, %s161
      %p173 = scmp.eq.s32.totalorder %s25, 1
      %p174 = por %p172, %p173
      %p176 = scmp.ne.s32.totalorder %s161, %s175
      %p177 = scmp.eq.s32.totalorder %s25, 0
      %p178 = por %p176, %p177
      %s180 = sadd.s32 %s179, 1
      %p183 = scmp.eq.s32.totalorder %s19, 1
      %p184 = scmp.ne.s32.totalorder %s179, %s181
      %p185 = scmp.eq.s32.totalorder %s19, 0
      %p186 = por %p184, %p185
      %p187 = scmp.ne.s32.totalorder %s179, %s181
      %p188 = scmp.eq.s32.totalorder %s24, 1
      %p189 = por %p187, %p188
      %p190 = scmp.ne.s32.totalorder %s181, %s182
      %p191 = scmp.eq.s32.totalorder %s24, 0
      %p192 = por %p190, %p191
      %p193 = scmp.ne.s32.totalorder %s181, %s182
      %p194 = scmp.eq.s32.totalorder %s25, 1
      %p195 = por %p193, %p194
      %p197 = scmp.ne.s32.totalorder %s182, %s196
      %p198 = scmp.eq.s32.totalorder %s25, 0
      %p199 = por %p197, %p198
      %s201 = sadd.s32 %s200, 1
      %p204 = scmp.eq.s32.totalorder %s19, 1
      %p205 = scmp.ne.s32.totalorder %s200, %s202
      %p206 = scmp.eq.s32.totalorder %s19, 0
      %p207 = por %p205, %p206
      %p208 = scmp.ne.s32.totalorder %s200, %s202
      %p209 = scmp.eq.s32.totalorder %s24, 1
      %p210 = por %p208, %p209
      %p211 = scmp.ne.s32.totalorder %s202, %s203
      %p212 = scmp.eq.s32.totalorder %s24, 0
      %p213 = por %p211, %p212
      %p214 = scmp.ne.s32.totalorder %s202, %s203
      %p215 = scmp.eq.s32.totalorder %s25, 1
      %p216 = por %p214, %p215
      %p218 = scmp.ne.s32.totalorder %s203, %s217
      %p219 = scmp.eq.s32.totalorder %s25, 0
      %p220 = por %p218, %p219
      %s221 = ssub.s32 %s19, %s26
      %p222 = scmp.eq.s32.totalorder %s221, 0
      %s224 = sadd.s32 %s223, 1
      %s225 = scalar_select %p222, %s223, %s224
      %p228 = pneg %p222
      %p229 = scmp.eq.s32.totalorder %s19, 1
      %p230 = por %p228, %p229
      %p231 = scmp.ne.s32.totalorder %s223, %s226
      %p232 = scmp.eq.s32.totalorder %s19, 0
      %p233 = por %p231, %p232
      %p234 = scmp.ne.s32.totalorder %s223, %s226
      %p235 = scmp.eq.s32.totalorder %s24, 1
      %p236 = por %p234, %p235
      %p237 = scmp.ne.s32.totalorder %s226, %s227
      %p238 = scmp.eq.s32.totalorder %s24, 0
      %p239 = por %p237, %p238
      %p240 = scmp.ne.s32.totalorder %s226, %s227
      %p241 = scmp.eq.s32.totalorder %s25, 1
      %p242 = por %p240, %p241
      %p244 = scmp.ne.s32.totalorder %s227, %s243
      %p245 = scmp.eq.s32.totalorder %s25, 0
      %p246 = por %p244, %p245
      %p247 = scmp.le.s32.totalorder 1, %s19
      %p248 = scmp.lt.s32.totalorder %s19, 3
      %p249 = pnand %p247, %p248
      %p250 = pneg %p249
      // Predicated region
      $region9: #{ode_flow_forward.1} parent=5 // pred_check
        _
      $region10: #{ode_flow_forward.1} parent=5 // pred_check_branch
        %252 = sbr.rel (%p249) target = $region12
      $region11: #{ode_flow_forward.1} parent=5 // pred_region
        %s253 = ssub.s32 %s19, 1
        // Predicated region
        $region13: #{ode_flow_forward.1} parent=11 // pred_check
          %p254 = pneg %p66
        $region14: #{ode_flow_forward.1} parent=11 // pred_check_branch
          %256 = sbr.rel (%p254) target = $region16
        $region15: #{ode_flow_forward.1} parent=11 // pred_region
          _
        $region16: #{ode_flow_forward.1} parent=11 // pred_fallthru
          _
        // Predicated region
        $region17: #{ode_flow_forward.1} parent=11 // pred_check
          %p257 = pneg %p87
        $region18: #{ode_flow_forward.1} parent=11 // pred_check_branch
          %259 = sbr.rel (%p257) target = $region20
        $region19: #{ode_flow_forward.1} parent=11 // pred_region
          _
        $region20: #{ode_flow_forward.1} parent=11 // pred_fallthru
          _
        // Predicated region
        $region21: #{ode_flow_forward.1} parent=11 // pred_check
          %p260 = pneg %p108
        $region22: #{ode_flow_forward.1} parent=11 // pred_check_branch
          %262 = sbr.rel (%p260) target = $region24
        $region23: #{ode_flow_forward.1} parent=11 // pred_region
          _
        $region24: #{ode_flow_forward.1} parent=11 // pred_fallthru
          _
        // Predicated region
        $region25: #{ode_flow_forward.1} parent=11 // pred_check
          %p263 = pneg %p129
        $region26: #{ode_flow_forward.1} parent=11 // pred_check_branch
          %265 = sbr.rel (%p263) target = $region28
        $region27: #{ode_flow_forward.1} parent=11 // pred_region
          _
        $region28: #{ode_flow_forward.1} parent=11 // pred_fallthru
          _
        // Predicated region
        $region29: #{ode_flow_forward.1} parent=11 // pred_check
          %p266 = pneg %p150
        $region30: #{ode_flow_forward.1} parent=11 // pred_check_branch
          %268 = sbr.rel (%p266) target = $region32
        $region31: #{ode_flow_forward.1} parent=11 // pred_region
          _
        $region32: #{ode_flow_forward.1} parent=11 // pred_fallthru
          _
        // Predicated region
        $region33: #{ode_flow_forward.1} parent=11 // pred_check
          %p269 = pneg %p171
        $region34: #{ode_flow_forward.1} parent=11 // pred_check_branch
          %271 = sbr.rel (%p269) target = $region36
        $region35: #{ode_flow_forward.1} parent=11 // pred_region
          _
        $region36: #{ode_flow_forward.1} parent=11 // pred_fallthru
          _
        // Predicated region
        $region37: #{ode_flow_forward.1} parent=11 // pred_check
          %p272 = pneg %p192
        $region38: #{ode_flow_forward.1} parent=11 // pred_check_branch
          %274 = sbr.rel (%p272) target = $region40
        $region39: #{ode_flow_forward.1} parent=11 // pred_region
          _
        $region40: #{ode_flow_forward.1} parent=11 // pred_fallthru
          _
        // Predicated region
        $region41: #{ode_flow_forward.1} parent=11 // pred_check
          %p275 = pneg %p213
        $region42: #{ode_flow_forward.1} parent=11 // pred_check_branch
          %277 = sbr.rel (%p275) target = $region44
        $region43: #{ode_flow_forward.1} parent=11 // pred_region
          _
        $region44: #{ode_flow_forward.1} parent=11 // pred_fallthru
          _
      $region12: #{ode_flow_forward.1} parent=5 // pred_fallthru
        _
      %p278 = scmp.lt.s32.totalorder %s19, 2
      // Predicated region
      $region45: #{ode_flow_forward.1} parent=5 // pred_check
        %p279 = pneg %p278
      $region46: #{ode_flow_forward.1} parent=5 // pred_check_branch
        %281 = sbr.rel (%p279) target = $region48
      $region47: #{ode_flow_forward.1} parent=5 // pred_region
        // Predicated region
        $region49: #{ode_flow_forward.1} parent=47 // pred_check
          %p282 = pneg %p39
        $region50: #{ode_flow_forward.1} parent=47 // pred_check_branch
          %284 = sbr.rel (%p282) target = $region52
        $region51: #{ode_flow_forward.1} parent=47 // pred_region
          %p285 = scmp.lt.s32.totalorder %s19, 1
          %s286 = scalar_select %p285, %s19, 1
          %s287 = smul.addr %s286, 4
          %s288 = scalar_lea.vmem %s0, %s287
        $region52: #{ode_flow_forward.1} parent=47 // pred_fallthru
          _
      $region48: #{ode_flow_forward.1} parent=5 // pred_fallthru
        _
      %p289 = scmp.le.s32.totalorder 1, %s19
      %p290 = scmp.lt.s32.totalorder %s19, 3
      %p291 = pnand %p289, %p290
      %p292 = pneg %p291
      // Predicated region
      $region53: #{ode_flow_forward.1} parent=5 // pred_check
        _
      $region54: #{ode_flow_forward.1} parent=5 // pred_check_branch
        %294 = sbr.rel (%p291) target = $region56
      $region55: #{ode_flow_forward.1} parent=5 // pred_region
        %s295 = ssub.s32 %s19, 1
        %p296 = scmp.lt.s32.totalorder %s24, 1
        %s297 = scalar_select %p296, %s24, 1
        %s298 = smul.addr %s297, 4
        %s299 = scalar_lea.vmem %s0, %s298
        %p300 = pneg %p45
        %p301 = pneg %p42
        %p302 = pneg %p66
        %p303 = pneg %p63
        %p304 = pneg %p87
        %p305 = pneg %p84
        %p306 = pneg %p108
        %p307 = pneg %p105
        %p308 = pneg %p129
        %p309 = pneg %p126
        %p310 = pneg %p150
        %p311 = pneg %p147
        %p312 = pneg %p171
        %p313 = pneg %p168
        %p314 = pneg %p192
        %p315 = pneg %p189
        %p316 = pneg %p213
        %p317 = pneg %p210
        %p318 = pneg %p239
        %p319 = pneg %p236
        %s320 = sand.u32 %s226, 1
        %s321 = scalar_lea.sflag [#allocation4], %s320
        %s322 = sand.u32 %s226, 1
        %s323 = smul.addr %s322, 4
        %s324 = scalar_lea.vmem [#allocation3], %s323
        %p325 = scmp.lt.s32.totalorder %s24, 1
        %s326 = scalar_select %p325, %s24, 1
        %s327 = smul.addr %s326, 4
        %s328 = scalar_lea.vmem %s0, %s327
        %s330 = sld [smem:[#allocation2]]
        %v331 = vld [vmem:[%s3] sm:$0xff]
        %v332 = vld [vmem:[%s3 + $0x8] sm:$0xff]
        %v333 = vld [vmem:[%s3 + $0x10] sm:$0xff]
        %v334 = vld [vmem:[%s3 + $0x18] sm:$0xff]
        %v335 = vstv %s330
        %v336 = vmul.f32 %v331, %v335
        %v337 = vmul.f32 %v332, %v335
        %v338 = vmul.f32 %v333, %v335
        %v339 = vmul.f32 %v334, %v335
        %v340 = vld [vmem:[%s4] sm:$0xff]
        %v341 = vld [vmem:[%s4 + $0x8] sm:$0xff]
        %v342 = vld [vmem:[%s4 + $0x10] sm:$0xff]
        %v343 = vld [vmem:[%s4 + $0x18] sm:$0xff]
        %v344 = vadd.f32 %v336, %v340
        %v345 = vadd.f32 %v337, %v341
        %v346 = vadd.f32 %v338, %v342
        %v347 = vadd.f32 %v339, %v343
        %v348 = vld [vmem:[%s328] sm:$0xf]
        %v349 = vld [vmem:[%s2] sm:$0xf]
        %v350 = vld [vmem:[%s2 + $0x4] sm:$0xf]
        %v351 = vld [vmem:[%s2 + $0x8] sm:$0xf]
        %v352 = vld [vmem:[%s2 + $0xc] sm:$0xf]
        %v353 = vld [vmem:[%s5] sm:$0xf]
        %v354 = vld [vmem:[%s5 + $0x4] sm:$0xf]
        %v355 = vld [vmem:[%s5 + $0x8] sm:$0xf]
        %v356 = vld [vmem:[%s5 + $0xc] sm:$0xf]
        %v357 = vld [vmem:[%s6] sm:$0xff]
        %v358 = vld [vmem:[%s6 + $0x8] sm:$0xff]
        %v359 = vld [vmem:[%s6 + $0x10] sm:$0xff]
        %v360 = vld [vmem:[%s6 + $0x18] sm:$0xff]
        %v361 = vld [vmem:[%s7] sm:$0x3]
        %v362 = vld [vmem:[%s8] sm:$0xf]
        %v363 = vpack.c.bf16 %v348, %v348
        %365 = vset.pattern.permute.xlu0 0
        %366 = vperm.xlu0 %365, %v344
        %v367 = vpop.permute.xlu0 %366
        %370 = vset.pattern.permute.xlu0 0
        %371 = vperm.xlu0 %370, %v345
        %v372 = vpop.permute.xlu0 %371
        %375 = vset.pattern.permute.xlu0 0
        %376 = vperm.xlu0 %375, %v346
        %v377 = vpop.permute.xlu0 %376
        %380 = vset.pattern.permute.xlu0 0
        %381 = vperm.xlu0 %380, %v347
        %v382 = vpop.permute.xlu0 %381
        %v388 = vunpack.c.l.b16 %v349
        %v389 = vunpack.c.l.b16 %v350
        %v390 = vunpack.c.l.b16 %v351
        %v391 = vunpack.c.l.b16 %v352
        %v392 = vpack.c.b16 %v389, %v388
        %v393 = vpack.c.b16 %v391, %v390
        %vm394 = vcmask 31744
        %v396 = vsel %vm394, %v392, 0
        %v399 = vsel %vm394, %v393, 0
        %vm401 = vcmask 1041408
        %v403 = vsel %vm401, %v363, 0
        %405 = vmatprep.subr.bf16.mxu0 0
        %406 = vmatpush1.bf16.msra.mxu0 %v403
        %407 = vmatprep.subr.bf16.mxu0 0
        %408 = vmatpush1.bf16.msra.mxu0 0
        %409 = vmatprep.subr.bf16.mxu0 0
        %410 = vmatpush1.bf16.msra.mxu0 0
        %411 = vmatprep.subr.bf16.mxu0 0
        %412 = vmatpush1.bf16.msra.mxu0 0
        %413 = vmatprep.subr.bf16.mxu0 0
        %414 = vmatpush1.bf16.msra.mxu0 0
        %415 = vmatprep.subr.bf16.mxu0 0
        %416 = vmatpush1.bf16.msra.mxu0 0
        %417 = vmatprep.subr.bf16.mxu0 0
        %418 = vmatpush1.bf16.msra.mxu0 0
        %419 = vmatprep.subr.bf16.mxu0 0
        %420 = vmatpush1.bf16.msra.mxu0 0
        %421 = vmatprep.subr.bf16.mxu0 0
        %422 = vmatpush1.bf16.msra.mxu0 0
        %423 = vmatprep.subr.bf16.mxu0 0
        %424 = vmatpush1.bf16.msra.mxu0 0
        %425 = vmatprep.subr.bf16.mxu0 0
        %426 = vmatpush1.bf16.msra.mxu0 0
        %427 = vmatprep.subr.bf16.mxu0 0
        %428 = vmatpush1.bf16.msra.mxu0 0
        %429 = vmatprep.subr.bf16.mxu0 0
        %430 = vmatpush1.bf16.msra.mxu0 0
        %431 = vmatprep.subr.bf16.mxu0 0
        %432 = vmatpush1.bf16.msra.mxu0 0
        %433 = vmatprep.subr.bf16.mxu0 0
        %434 = vmatpush1.bf16.msra.mxu0 0
        %435 = vmatprep.subr.bf16.mxu0 0
        %436 = vmatpush1.bf16.msra.mxu0 0
        %437 = vmatprep.mubr.bf16.mxu0 0
        %438 = vmatmul.mubr.bf16.gmra.mrb[0].mxu0 %v396
        %v439 = vpop.f32.mrb[0].mxu0
        %v440 = vadd.f32 %v367, %v439
        %v441 = vpop.f32.mrb[0].mxu0
        %v442 = vpop.f32.mrb[0].mxu0
        %v443 = vadd.f32 %v372, %v442
        %v444 = vpop.f32.mrb[0].mxu0
        %445 = vmatprep.mubr.bf16.mxu0 0
        %446 = vmatmul.mubr.bf16.gmra.mrb[0].mxu0 %v399
        %v447 = vpop.f32.mrb[0].mxu0
        %v448 = vadd.f32 %v377, %v447
        %v449 = vpop.f32.mrb[0].mxu0
        %v450 = vpop.f32.mrb[0].mxu0
        %v451 = vadd.f32 %v382, %v450
        %v452 = vpop.f32.mrb[0].mxu0
        %453 = vdwg.mxu0
        %v454 = vsub.f32 0.0, %v440
        %v455 = vsub.f32 0.0, %v443
        %v456 = vsub.f32 0.0, %v448
        %v457 = vsub.f32 0.0, %v451
        %v458 = vmul.f32 %v454, 1.442695
        %v459 = vpow.pop %v458
        %v460 = vmul.f32 %v455, 1.442695
        %v461 = vpow.pop %v460
        %v462 = vmul.f32 %v456, 1.442695
        %v463 = vpow.pop %v462
        %v464 = vmul.f32 %v457, 1.442695
        %v465 = vpow.pop %v464
        %v466 = vadd.f32 %v459, 1.0
        %v467 = vadd.f32 %v461, 1.0
        %v468 = vadd.f32 %v463, 1.0
        %v469 = vadd.f32 %v465, 1.0
        %v470 = vrcp.pop %v466
        %v471 = vrcp.pop %v467
        %v472 = vrcp.pop %v468
        %v473 = vrcp.pop %v469
        %v474 = vmul.f32 %v440, %v470
        %v475 = vmul.f32 %v443, %v471
        %v476 = vmul.f32 %v448, %v472
        %v477 = vmul.f32 %v451, %v473
        %v478 = vpack.c.bf16 %v475, %v474
        %v479 = vpack.c.bf16 %v477, %v476
        %481 = vset.pattern.permute.xlu0 0
        %482 = vperm.xlu0 %481, %v357
        %v483 = vpop.permute.xlu0 %482
        %486 = vset.pattern.permute.xlu0 0
        %487 = vperm.xlu0 %486, %v358
        %v488 = vpop.permute.xlu0 %487
        %491 = vset.pattern.permute.xlu0 0
        %492 = vperm.xlu0 %491, %v359
        %v493 = vpop.permute.xlu0 %492
        %496 = vset.pattern.permute.xlu0 0
        %497 = vperm.xlu0 %496, %v360
        %v498 = vpop.permute.xlu0 %497
        %v504 = vunpack.c.l.b16 %v353
        %v505 = vunpack.c.l.b16 %v354
        %v506 = vunpack.c.l.b16 %v355
        %v507 = vunpack.c.l.b16 %v356
        %v508 = vpack.c.b16 %v505, %v504
        %v509 = vpack.c.b16 %v507, %v506
        %vm510 = vcmask 261120
        %v512 = vsel %vm510, %v508, 0
        %v515 = vsel %vm510, %v509, 0
        %517 = vmatprep.subr.bf16.mxu0 0
        %518 = vmatpush1.bf16.msra.mxu0 %v478
        %519 = vmatprep.subr.bf16.mxu0 0
        %520 = vmatpush1.bf16.msra.mxu0 %v479
        %521 = vmatprep.subr.bf16.mxu0 0
        %522 = vmatpush1.bf16.msra.mxu0 0
        %523 = vmatprep.subr.bf16.mxu0 0
        %524 = vmatpush1.bf16.msra.mxu0 0
        %525 = vmatprep.subr.bf16.mxu0 0
        %526 = vmatpush1.bf16.msra.mxu0 0
        %527 = vmatprep.subr.bf16.mxu0 0
        %528 = vmatpush1.bf16.msra.mxu0 0
        %529 = vmatprep.subr.bf16.mxu0 0
        %530 = vmatpush1.bf16.msra.mxu0 0
        %531 = vmatprep.subr.bf16.mxu0 0
        %532 = vmatpush1.bf16.msra.mxu0 0
        %533 = vmatprep.subr.bf16.mxu0 0
        %534 = vmatpush1.bf16.msra.mxu0 0
        %535 = vmatprep.subr.bf16.mxu0 0
        %536 = vmatpush1.bf16.msra.mxu0 0
        %537 = vmatprep.subr.bf16.mxu0 0
        %538 = vmatpush1.bf16.msra.mxu0 0
        %539 = vmatprep.subr.bf16.mxu0 0
        %540 = vmatpush1.bf16.msra.mxu0 0
        %541 = vmatprep.subr.bf16.mxu0 0
        %542 = vmatpush1.bf16.msra.mxu0 0
        %543 = vmatprep.subr.bf16.mxu0 0
        %544 = vmatpush1.bf16.msra.mxu0 0
        %545 = vmatprep.subr.bf16.mxu0 0
        %546 = vmatpush1.bf16.msra.mxu0 0
        %547 = vmatprep.subr.bf16.mxu0 0
        %548 = vmatpush1.bf16.msra.mxu0 0
        %549 = vmatprep.mubr.bf16.mxu0 0
        %550 = vmatmul.mubr.bf16.gmra.mrb[0].mxu0 %v512
        %v551 = vpop.f32.mrb[0].mxu0
        %v552 = vadd.f32 %v483, %v551
        %v553 = vpop.f32.mrb[0].mxu0
        %v554 = vpop.f32.mrb[0].mxu0
        %v555 = vadd.f32 %v488, %v554
        %v556 = vpop.f32.mrb[0].mxu0
        %557 = vmatprep.mubr.bf16.mxu0 0
        %558 = vmatmul.mubr.bf16.gmra.mrb[0].mxu0 %v515
        %v559 = vpop.f32.mrb[0].mxu0
        %v560 = vadd.f32 %v493, %v559
        %v561 = vpop.f32.mrb[0].mxu0
        %v562 = vpop.f32.mrb[0].mxu0
        %v563 = vadd.f32 %v498, %v562
        %v564 = vpop.f32.mrb[0].mxu0
        %565 = vdwg.mxu0
        %v566 = vsub.f32 0.0, %v552
        %v567 = vsub.f32 0.0, %v555
        %v568 = vsub.f32 0.0, %v560
        %v569 = vsub.f32 0.0, %v563
        %v570 = vmul.f32 %v566, 1.442695
        %v571 = vpow.pop %v570
        %v572 = vmul.f32 %v567, 1.442695
        %v573 = vpow.pop %v572
        %v574 = vmul.f32 %v568, 1.442695
        %v575 = vpow.pop %v574
        %v576 = vmul.f32 %v569, 1.442695
        %v577 = vpow.pop %v576
        %v578 = vadd.f32 %v571, 1.0
        %v579 = vadd.f32 %v573, 1.0
        %v580 = vadd.f32 %v575, 1.0
        %v581 = vadd.f32 %v577, 1.0
        %v582 = vrcp.pop %v578
        %v583 = vrcp.pop %v579
        %v584 = vrcp.pop %v580
        %v585 = vrcp.pop %v581
        %v586 = vmul.f32 %v552, %v582
        %v587 = vmul.f32 %v555, %v583
        %v588 = vmul.f32 %v560, %v584
        %v589 = vmul.f32 %v563, %v585
        %v590 = vpack.c.bf16 %v587, %v586
        %v591 = vpack.c.bf16 %v589, %v588
        %593 = vset.pattern.permute.xlu0 0
        %594 = vperm.xlu0 %593, %v362
        %v595 = vpop.permute.xlu0 %594
        %v598 = vsel %vm510, %v361, 0
        %600 = vmatprep.subr.bf16.mxu0 0
        %601 = vmatpush1.bf16.msra.mxu0 %v590
        %602 = vmatprep.subr.bf16.mxu0 0
        %603 = vmatpush1.bf16.msra.mxu0 %v591
        %604 = vmatprep.subr.bf16.mxu0 0
        %605 = vmatpush1.bf16.msra.mxu0 0
        %606 = vmatprep.subr.bf16.mxu0 0
        %607 = vmatpush1.bf16.msra.mxu0 0
        %608 = vmatprep.subr.bf16.mxu0 0
        %609 = vmatpush1.bf16.msra.mxu0 0
        %610 = vmatprep.subr.bf16.mxu0 0
        %611 = vmatpush1.bf16.msra.mxu0 0
        %612 = vmatprep.subr.bf16.mxu0 0
        %613 = vmatpush1.bf16.msra.mxu0 0
        %614 = vmatprep.subr.bf16.mxu0 0
        %615 = vmatpush1.bf16.msra.mxu0 0
        %616 = vmatprep.subr.bf16.mxu0 0
        %617 = vmatpush1.bf16.msra.mxu0 0
        %618 = vmatprep.subr.bf16.mxu0 0
        %619 = vmatpush1.bf16.msra.mxu0 0
        %620 = vmatprep.subr.bf16.mxu0 0
        %621 = vmatpush1.bf16.msra.mxu0 0
        %622 = vmatprep.subr.bf16.mxu0 0
        %623 = vmatpush1.bf16.msra.mxu0 0
        %624 = vmatprep.subr.bf16.mxu0 0
        %625 = vmatpush1.bf16.msra.mxu0 0
        %626 = vmatprep.subr.bf16.mxu0 0
        %627 = vmatpush1.bf16.msra.mxu0 0
        %628 = vmatprep.subr.bf16.mxu0 0
        %629 = vmatpush1.bf16.msra.mxu0 0
        %630 = vmatprep.subr.bf16.mxu0 0
        %631 = vmatpush1.bf16.msra.mxu0 0
        %632 = vmatprep.mubr.bf16.mxu0 0
        %633 = vmatmul.mubr.bf16.gmra.mrb[0].mxu0 %v598
        %v634 = vpop.f32.mrb[0].mxu0
        %v635 = vadd.f32 %v595, %v634
        %v636 = vpop.f32.mrb[0].mxu0
        %v637 = vpop.f32.mrb[0].mxu0
        %v638 = vpop.f32.mrb[0].mxu0
        %639 = vdwg.mxu0
        %640 = vst [vmem:[%s324] sm:$0xf] %v635
        %s641 = sand.u32 %s226, 1
        %s642 = scalar_lea.sflag [#allocation4], %s641
        %s643 = sand.u32 %s226, 1
        %s644 = smul.addr %s643, 4
        %s645 = scalar_lea.vmem [#allocation3], %s644
        // Predicated region
        $region57: #{ode_flow_forward.1} parent=55 // pred_check
          %p646 = pneg %p236
        $region58: #{ode_flow_forward.1} parent=55 // pred_check_branch
          %648 = sbr.rel (%p646) target = $region60
        $region59: #{ode_flow_forward.1} parent=55 // pred_region
          %s650 = ssub.s32 64, 64
          %651 = vsyncadd %s642, %s650
          %s652 = smul.addr %s24, 64
          %s653 = scalar_lea.hbm %s9, %s652
          %s655 = sshll.u32 %s645, 4
          %s656 = int_to_ptr.vmem [resolvable:$true] %s655
          %658 = dma.vmem_to_hbm [thread:$0]  %s656, 64, %s653, %s642
        $region60: #{ode_flow_forward.1} parent=55 // pred_fallthru
          _
      $region56: #{ode_flow_forward.1} parent=5 // pred_fallthru
        _
      %p659 = scmp.le.s32.totalorder 2, %s19
      // Predicated region
      $region61: #{ode_flow_forward.1} parent=5 // pred_check
        %p660 = pneg %p659
      $region62: #{ode_flow_forward.1} parent=5 // pred_check_branch
        %662 = sbr.rel (%p660) target = $region64
      $region63: #{ode_flow_forward.1} parent=5 // pred_region
        %s663 = ssub.s32 %s19, 2
        // Predicated region
        $region65: #{ode_flow_forward.1} parent=63 // pred_check
          %p664 = pneg %p242
        $region66: #{ode_flow_forward.1} parent=63 // pred_check_branch
          %666 = sbr.rel (%p664) target = $region68
        $region67: #{ode_flow_forward.1} parent=63 // pred_region
          %s667 = sand.u32 %s227, 1
          %s668 = scalar_lea.sflag [#allocation4], %s667
          %s669 = sand.u32 %s227, 1
          %s670 = smul.addr %s669, 4
          %s671 = scalar_lea.vmem [#allocation3], %s670
          %672 = dma.done %s668, 64
        $region68: #{ode_flow_forward.1} parent=63 // pred_fallthru
          _
      $region64: #{ode_flow_forward.1} parent=5 // pred_fallthru
        _
    $region6: #{ode_flow_forward.1} parent=1 // loop_footer
      %s23 = sadd.s32 1, %s19
    $region7: #{ode_flow_forward.1} parent=1 // loop_footer_branch
      %18 = sbr.rel target = $region3
    $region8: #{ode_flow_forward.1} parent=1 // loop_exit
      _
    %673 = vsyncpa [#allocation4], 1
    %s674 = scalar_lea.sflag [#allocation4], 1
    %675 = vsyncpa %s674, 1

</llo_original>
